<compile_context>
chip_gen: v7x
topology: tpu7x:2x2x1
jax: 0.10.0
libtpu: 0.0.40
codegen_flags: <defaults>
</compile_context>

<pallas_src>
import functools

import jax
import jax.numpy as jnp
from jax.experimental import pallas as pl
from jax.experimental.pallas import tpu as pltpu

INPUT_SIZE = 784
HIDDEN1 = 150
HIDDEN2 = 50
NUM_CLASSES = 10

SUBLANE = 8
LANE = 128

# Lane-padded (multiple-of-128) feature dims.
IN_PAD = 896    # 784 -> 896
H1_PAD = 256    # 150 -> 256
H2_PAD = 128    #  50 -> 128
OUT_PAD = 128   #  10 -> 128


def _round_up(n, m):
    return (n + m - 1) // m * m


def _pad_to(a, shape):
    return jnp.pad(a, [(0, t - s) for s, t in zip(a.shape, shape)])


# ----------------------------------------------------------------------------
# Kernel: all three matmuls + bias + ReLU fused; runs once per batch tile.
# ----------------------------------------------------------------------------
def mlp_kernel(x_ref, w1_ref, b1_ref, w2_ref, b2_ref, w3_ref, b3_ref, o_ref):
    x = x_ref[...]                                                   # (TB, 896) bf16
    h1 = jnp.dot(x, w1_ref[...], preferred_element_type=jnp.float32) + b1_ref[...]
    h1 = jnp.maximum(h1, 0.0).astype(jnp.bfloat16)                   # (TB, 256)
    h2 = jnp.dot(h1, w2_ref[...], preferred_element_type=jnp.float32) + b2_ref[...]
    h2 = jnp.maximum(h2, 0.0).astype(jnp.bfloat16)                   # (TB, 128)
    out = jnp.dot(h2, w3_ref[...], preferred_element_type=jnp.float32) + b3_ref[...]
    o_ref[...] = out.astype(o_ref.dtype)                             # (TB, 128) lane-dense


# ----------------------------------------------------------------------------
# Parameter preparation (done once): lane-pad + cast matmul operands to bf16.
# ----------------------------------------------------------------------------
def prepare_params(w1, b1, w2, b2, w3, b3):
    w1p = _pad_to(w1, (IN_PAD, H1_PAD)).astype(jnp.bfloat16)
    b1p = _pad_to(b1, (1, H1_PAD)).astype(jnp.float32)
    w2p = _pad_to(w2, (H1_PAD, H2_PAD)).astype(jnp.bfloat16)
    b2p = _pad_to(b2, (1, H2_PAD)).astype(jnp.float32)
    w3p = _pad_to(w3, (H2_PAD, OUT_PAD)).astype(jnp.bfloat16)
    b3p = _pad_to(b3, (1, OUT_PAD)).astype(jnp.float32)
    return w1p, b1p, w2p, b2p, w3p, b3p


# ----------------------------------------------------------------------------
# Forward wrapper: grid over batch tiles, resident weights, parallel semantics.
# ----------------------------------------------------------------------------
@functools.partial(jax.jit, static_argnames=("tb",))
def mlp_forward(x, w1p, b1p, w2p, b2p, w3p, b3p, *, tb=256):
    # TODO(synk): at batch <= ~8 in production, launch overhead dominates —
    # aggregate requests or fall back to plain XLA matmuls.
    batch = x.shape[0]
    tb_eff = min(tb, _round_up(batch, SUBLANE))      # clamp tile for tiny batches
    padded_batch = _round_up(batch, tb_eff)
    xp = _pad_to(x, (padded_batch, IN_PAD)).astype(jnp.bfloat16)

    const = lambda i: (0, 0)   # weights/biases: resident, fetched once

    out = pl.pallas_call(
        mlp_kernel,
        out_shape=jax.ShapeDtypeStruct((padded_batch, OUT_PAD), jnp.float32),
        grid=(padded_batch // tb_eff,),
        in_specs=[
            pl.BlockSpec((tb_eff, IN_PAD), lambda i: (i, 0)),       # x: streamed
            pl.BlockSpec((IN_PAD, H1_PAD), const),                  # w1
            pl.BlockSpec((1, H1_PAD), const),                       # b1
            pl.BlockSpec((H1_PAD, H2_PAD), const),                  # w2
            pl.BlockSpec((1, H2_PAD), const),                       # b2
            pl.BlockSpec((H2_PAD, OUT_PAD), const),                 # w3
            pl.BlockSpec((1, OUT_PAD), const),                      # b3
        ],
        out_specs=pl.BlockSpec((tb_eff, OUT_PAD), lambda i: (i, 0)),
        compiler_params=pltpu.CompilerParams(
            dimension_semantics=("parallel",),   # shard batch tiles across TCs (v7x)
        ),
    )(xp, w1p, b1p, w2p, b2p, w3p, b3p)

    return out[:batch, :NUM_CLASSES]


# ----------------------------------------------------------------------------
# Init + references
# ----------------------------------------------------------------------------
def init_params(key):
    """Deterministic init mimicking nn.Linear's uniform(-1/sqrt(fan_in), ...)."""
    ks = jax.random.split(key, 6)

    def linear(kw, kb, fan_in, fan_out):
        bound = 1.0 / (fan_in ** 0.5)
        # stored as (in, out) = PyTorch weight transposed
        w = jax.random.uniform(kw, (fan_in, fan_out), jnp.float32, -bound, bound)
        b = jax.random.uniform(kb, (1, fan_out), jnp.float32, -bound, bound)
        return w, b

    w1, b1 = linear(ks[0], ks[1], INPUT_SIZE, HIDDEN1)
    w2, b2 = linear(ks[2], ks[3], HIDDEN1, HIDDEN2)
    w3, b3 = linear(ks[4], ks[5], HIDDEN2, NUM_CLASSES)
    return w1, b1, w2, b2, w3, b3


def reference_forward_f32(x, w1, b1, w2, b2, w3, b3):
    """Pure f32 reference (matches the PyTorch module exactly)."""
    h1 = jax.nn.relu(x @ w1 + b1)
    h2 = jax.nn.relu(h1 @ w2 + b2)
    return h2 @ w3 + b3


def reference_forward_bf16(x, w1, b1, w2, b2, w3, b3):
    """Reference matching the kernel's bf16-input / f32-accum numerics."""
    xb = x.astype(jnp.bfloat16)
    w1b, w2b, w3b = (w.astype(jnp.bfloat16) for w in (w1, w2, w3))
    h1 = jnp.maximum(jnp.dot(xb, w1b, preferred_element_type=jnp.float32) + b1, 0.0)
    h2 = jnp.maximum(
        jnp.dot(h1.astype(jnp.bfloat16), w2b, preferred_element_type=jnp.float32) + b2, 0.0)
    return jnp.dot(h2.astype(jnp.bfloat16), w3b, preferred_element_type=jnp.float32) + b3


if __name__ == "__main__":
    key = jax.random.PRNGKey(0)
    k_x, k_p = jax.random.split(key)

    batch = 2
    x = jax.random.normal(k_x, (batch, INPUT_SIZE), dtype=jnp.float32)
    params = init_params(k_p)
    padded_params = prepare_params(*params)

    out = mlp_forward(x, *padded_params)
    out = jax.block_until_ready(out)

    assert out.shape == (batch, NUM_CLASSES)
    # Tight check against a reference with identical bf16/f32 numerics.
    ref_bf16 = reference_forward_bf16(x, *params)
    assert jnp.allclose(out, ref_bf16, atol=2e-3, rtol=2e-3), (
        jnp.max(jnp.abs(out - ref_bf16)))
    # Looser check against the exact-f32 PyTorch-equivalent forward (bf16
    # input rounding shifts values by O(1e-2) at this fan-in).
    ref_f32 = reference_forward_f32(x, *params)
    assert jnp.allclose(out, ref_f32, atol=1e-1, rtol=1e-1), (
        jnp.max(jnp.abs(out - ref_f32)))

    print("KERNEL_OK")
</pallas_src>

<mosaic_0001>
module attributes {stable_mosaic.version = 11 : i64} {
  func.func @mlp_kernel(%arg0: i32, %arg1: memref<8x896xbf16, #tpu.memory_space<vmem>>, %arg2: memref<896x256xbf16, #tpu.memory_space<vmem>>, %arg3: memref<1x256xf32, #tpu.memory_space<vmem>>, %arg4: memref<256x128xbf16, #tpu.memory_space<vmem>>, %arg5: memref<1x128xf32, #tpu.memory_space<vmem>>, %arg6: memref<128x128xbf16, #tpu.memory_space<vmem>>, %arg7: memref<1x128xf32, #tpu.memory_space<vmem>>, %arg8: memref<8x128xf32, #tpu.memory_space<vmem>>) attributes {dimension_semantics = [#tpu.dimension_semantics<parallel>], iteration_bounds = array<i64: 1>, scalar_prefetch = 0 : i64, scratch_operands = 0 : i64, tpu.core_type = #tpu.core_type<tc>, window_params = [{transform_indices = @transform_0, window_bounds = array<i64: 8, 896>}, {pipeline_mode = #tpu.pipeline_mode<synchronous>, transform_indices = @transform_1, window_bounds = array<i64: 896, 256>}, {pipeline_mode = #tpu.pipeline_mode<synchronous>, transform_indices = @transform_2, window_bounds = array<i64: 1, 256>}, {pipeline_mode = #tpu.pipeline_mode<synchronous>, transform_indices = @transform_3, window_bounds = array<i64: 256, 128>}, {pipeline_mode = #tpu.pipeline_mode<synchronous>, transform_indices = @transform_4, window_bounds = array<i64: 1, 128>}, {pipeline_mode = #tpu.pipeline_mode<synchronous>, transform_indices = @transform_5, window_bounds = array<i64: 128, 128>}, {pipeline_mode = #tpu.pipeline_mode<synchronous>, transform_indices = @transform_6, window_bounds = array<i64: 1, 128>}, {transform_indices = @transform_7, window_bounds = array<i64: 8, 128>}]} {
    %c0 = arith.constant 0 : index
    %c0_0 = arith.constant 0 : index
    %0 = vector.load %arg1[%c0, %c0_0] : memref<8x896xbf16, #tpu.memory_space<vmem>>, vector<8x896xbf16>
    %c0_1 = arith.constant 0 : index
    %c0_2 = arith.constant 0 : index
    %1 = vector.load %arg2[%c0_1, %c0_2] : memref<896x256xbf16, #tpu.memory_space<vmem>>, vector<896x256xbf16>
    %cst = arith.constant dense<0.000000e+00> : vector<8x256xf32>
    %2 = tpu.matmul %0, %1, %cst {dimension_numbers = #tpu.dot_dimension_numbers<[1], [0], [0], [1], [0, 0, 1, 1], [], []>} : vector<8x896xbf16>, vector<896x256xbf16>, vector<8x256xf32> -> vector<8x256xf32>
    %c0_3 = arith.constant 0 : index
    %c0_4 = arith.constant 0 : index
    %3 = vector.load %arg3[%c0_3, %c0_4] : memref<1x256xf32, #tpu.memory_space<vmem>>, vector<1x256xf32>
    %4 = vector.broadcast %3 : vector<1x256xf32> to vector<8x256xf32>
    %5 = arith.addf %2, %4 : vector<8x256xf32>
    %cst_5 = arith.constant 0.000000e+00 : f32
    %6 = vector.broadcast %cst_5 : f32 to vector<8x256xf32>
    %7 = arith.maximumf %5, %6 : vector<8x256xf32>
    %8 = arith.truncf %7 : vector<8x256xf32> to vector<8x256xbf16>
    %c0_6 = arith.constant 0 : index
    %c0_7 = arith.constant 0 : index
    %9 = vector.load %arg4[%c0_6, %c0_7] : memref<256x128xbf16, #tpu.memory_space<vmem>>, vector<256x128xbf16>
    %cst_8 = arith.constant dense<0.000000e+00> : vector<8x128xf32>
    %10 = tpu.matmul %8, %9, %cst_8 {dimension_numbers = #tpu.dot_dimension_numbers<[1], [0], [0], [1], [0, 0, 1, 1], [], []>} : vector<8x256xbf16>, vector<256x128xbf16>, vector<8x128xf32> -> vector<8x128xf32>
    %c0_9 = arith.constant 0 : index
    %c0_10 = arith.constant 0 : index
    %11 = vector.load %arg5[%c0_9, %c0_10] : memref<1x128xf32, #tpu.memory_space<vmem>>, vector<1x128xf32>
    %12 = vector.broadcast %11 : vector<1x128xf32> to vector<8x128xf32>
    %13 = arith.addf %10, %12 : vector<8x128xf32>
    %cst_11 = arith.constant 0.000000e+00 : f32
    %14 = vector.broadcast %cst_11 : f32 to vector<8x128xf32>
    %15 = arith.maximumf %13, %14 : vector<8x128xf32>
    %16 = arith.truncf %15 : vector<8x128xf32> to vector<8x128xbf16>
    %c0_12 = arith.constant 0 : index
    %c0_13 = arith.constant 0 : index
    %17 = vector.load %arg6[%c0_12, %c0_13] : memref<128x128xbf16, #tpu.memory_space<vmem>>, vector<128x128xbf16>
    %cst_14 = arith.constant dense<0.000000e+00> : vector<8x128xf32>
    %18 = tpu.matmul %16, %17, %cst_14 {dimension_numbers = #tpu.dot_dimension_numbers<[1], [0], [0], [1], [0, 0, 1, 1], [], []>} : vector<8x128xbf16>, vector<128x128xbf16>, vector<8x128xf32> -> vector<8x128xf32>
    %c0_15 = arith.constant 0 : index
    %c0_16 = arith.constant 0 : index
    %19 = vector.load %arg7[%c0_15, %c0_16] : memref<1x128xf32, #tpu.memory_space<vmem>>, vector<1x128xf32>
    %20 = vector.broadcast %19 : vector<1x128xf32> to vector<8x128xf32>
    %21 = arith.addf %18, %20 : vector<8x128xf32>
    %c0_17 = arith.constant 0 : index
    %c0_18 = arith.constant 0 : index
    %22 = vector.load %arg8[%c0_17, %c0_18] : memref<8x128xf32, #tpu.memory_space<vmem>>, vector<8x128xf32>
    tpu.vector_store %arg8[%c0_17, %c0_18], %21 {strides = array<i32>} : memref<8x128xf32, #tpu.memory_space<vmem>>, vector<8x128xf32>,
    return
  }
  func.func @transform_0(%arg0: i32) -> (i32, i32) {
    %c0_i32 = arith.constant 0 : i32
    %c0_i32_0 = arith.constant 0 : i32
    return %arg0, %c0_i32 : i32, i32
  }
  func.func @transform_1(%arg0: i32) -> (i32, i32) {
    %c0_i32 = arith.constant 0 : i32
    %c0_i32_0 = arith.constant 0 : i32
    %c0_i32_1 = arith.constant 0 : i32
    return %c0_i32, %c0_i32_0 : i32, i32
  }
  func.func @transform_2(%arg0: i32) -> (i32, i32) {
    %c0_i32 = arith.constant 0 : i32
    %c0_i32_0 = arith.constant 0 : i32
    %c0_i32_1 = arith.constant 0 : i32
    return %c0_i32, %c0_i32_0 : i32, i32
  }
  func.func @transform_3(%arg0: i32) -> (i32, i32) {
    %c0_i32 = arith.constant 0 : i32
    %c0_i32_0 = arith.constant 0 : i32
    %c0_i32_1 = arith.constant 0 : i32
    return %c0_i32, %c0_i32_0 : i32, i32
  }
  func.func @transform_4(%arg0: i32) -> (i32, i32) {
    %c0_i32 = arith.constant 0 : i32
    %c0_i32_0 = arith.constant 0 : i32
    %c0_i32_1 = arith.constant 0 : i32
    return %c0_i32, %c0_i32_0 : i32, i32
  }
  func.func @transform_5(%arg0: i32) -> (i32, i32) {
    %c0_i32 = arith.constant 0 : i32
    %c0_i32_0 = arith.constant 0 : i32
    %c0_i32_1 = arith.constant 0 : i32
    return %c0_i32, %c0_i32_0 : i32, i32
  }
  func.func @transform_6(%arg0: i32) -> (i32, i32) {
    %c0_i32 = arith.constant 0 : i32
    %c0_i32_0 = arith.constant 0 : i32
    %c0_i32_1 = arith.constant 0 : i32
    return %c0_i32, %c0_i32_0 : i32, i32
  }
  func.func @transform_7(%arg0: i32) -> (i32, i32) {
    %c0_i32 = arith.constant 0 : i32
    %c0_i32_0 = arith.constant 0 : i32
    return %arg0, %c0_i32 : i32, i32
  }
}

</mosaic_0001>

<llo_original>
// kernel: mlp_forward.1
$region0: #{mlp_forward.1}
  #allocation0 [shape = 'u32[]', space=smem, size = 0x4, offset = 0x4, fixed_abs, tag = 'smem constant byte address 0x4 - core index']
  #allocation1 [shape = 'u32[144,128]{1,0:T(1,128)}', space=vmem, size = 0x12000, scoped, tag = 'internal scratch']
  %s0 = inlined_call_operand.vmem [shape: bf16[8,896], index: 0, kind: input, shape index: {}]
  %s1 = inlined_call_operand.hbm [shape: bf16[896,256], index: 1, kind: input, shape index: {}]
  %s2 = inlined_call_operand.vmem [shape: f32[1,256], index: 2, kind: input, shape index: {}]
  %s3 = inlined_call_operand.hbm [shape: bf16[256,128], index: 3, kind: input, shape index: {}]
  %s4 = inlined_call_operand.vmem [shape: f32[1,128], index: 4, kind: input, shape index: {}]
  %s5 = inlined_call_operand.vmem [shape: bf16[128,128], index: 5, kind: input, shape index: {}]
  %s6 = inlined_call_operand.vmem [shape: f32[1,128], index: 6, kind: input, shape index: {}]
  %s7 = inlined_call_operand.vmem [shape: f32[8,128], index: 7, kind: output, shape index: {}]
  %s8 = sld [smem:[#allocation0]]
  $region46: #{mlp_forward.1} parent=0
    _
  %s10 = ssub.s32 1, %s8
  %s11 = scalar_select 0, %s10, %s8
  $region1: #{mlp_forward.1} parent=0
    #allocation2 [shape = 'u8[458752]{0}', space=vmem, size = 0x70000, scoped, tag = 'input window, operand 1, single buffered']
    #allocation3 [shape = 's32[1]{0}', space=sflag, size = 0x4, scoped, tag = 'scoped memory for mlp_forward.1']
    #allocation4 [shape = 'u8[65536]{0}', space=vmem, size = 0x10000, scoped, tag = 'input window, operand 3, single buffered']
    #allocation5 [shape = 's32[1]{0}', space=sflag, size = 0x4, scoped, tag = 'scoped memory for mlp_forward.1']
    %12 = vsyncpa [#allocation3], 0
    %13 = vsyncpa [#allocation5], 0
    // Predicated region
    $region2: #{mlp_forward.1} parent=1 // pred_check
      _
    $region3: #{mlp_forward.1} parent=1 // pred_check_branch
      %15 = sbr.rel (0) target = $region5
    $region4: #{mlp_forward.1} parent=1 // pred_region
      _
    $region5: #{mlp_forward.1} parent=1 // pred_fallthru
      _
    // Predicated region
    $region6: #{mlp_forward.1} parent=1 // pred_check
      _
    $region7: #{mlp_forward.1} parent=1 // pred_check_branch
      %17 = sbr.rel (0) target = $region9
    $region8: #{mlp_forward.1} parent=1 // pred_region
      %s19 = ssub.s32 14336, 14336
      %20 = vsyncadd [#allocation3], %s19
      %s21 = sshll.u32 [#allocation2], 4
      %s22 = int_to_ptr.vmem [resolvable:$true] %s21
      %27 = dma.hbm_to_vmem [thread:$0]  %s1, 14336, %s22, [#allocation3], 128, 128, 8
    $region9: #{mlp_forward.1} parent=1 // pred_fallthru
      _
    // Predicated region
    $region10: #{mlp_forward.1} parent=1 // pred_check
      _
    $region11: #{mlp_forward.1} parent=1 // pred_check_branch
      %29 = sbr.rel (0) target = $region13
    $region12: #{mlp_forward.1} parent=1 // pred_region
      _
    $region13: #{mlp_forward.1} parent=1 // pred_fallthru
      _
    // Predicated region
    $region14: #{mlp_forward.1} parent=1 // pred_check
      _
    $region15: #{mlp_forward.1} parent=1 // pred_check_branch
      %31 = sbr.rel (0) target = $region17
    $region16: #{mlp_forward.1} parent=1 // pred_region
      %s33 = ssub.s32 2048, 2048
      %34 = vsyncadd [#allocation5], %s33
      %s35 = sshll.u32 [#allocation4], 4
      %s36 = int_to_ptr.vmem [resolvable:$true] %s35
      %41 = dma.hbm_to_vmem [thread:$0]  %s3, 2048, %s36, [#allocation5], 64, 64, 4
    $region17: #{mlp_forward.1} parent=1 // pred_fallthru
      _
    // Predicated region
    $region18: #{mlp_forward.1} parent=1 // pred_check
      _
    $region19: #{mlp_forward.1} parent=1 // pred_check_branch
      %43 = sbr.rel (0) target = $region21
    $region20: #{mlp_forward.1} parent=1 // pred_region
      _
    $region21: #{mlp_forward.1} parent=1 // pred_fallthru
      _
    // Predicated region
    $region22: #{mlp_forward.1} parent=1 // pred_check
      _
    $region23: #{mlp_forward.1} parent=1 // pred_check_branch
      %45 = sbr.rel (0) target = $region25
    $region24: #{mlp_forward.1} parent=1 // pred_region
      _
    $region25: #{mlp_forward.1} parent=1 // pred_fallthru
      _
    // Predicated region
    $region26: #{mlp_forward.1} parent=1 // pred_check
      _
    $region27: #{mlp_forward.1} parent=1 // pred_check_branch
      %47 = sbr.rel (0) target = $region29
    $region28: #{mlp_forward.1} parent=1 // pred_region
      _
    $region29: #{mlp_forward.1} parent=1 // pred_fallthru
      _
    // Predicated region
    $region30: #{mlp_forward.1} parent=1 // pred_check
      _
    $region31: #{mlp_forward.1} parent=1 // pred_check_branch
      %49 = sbr.rel (0) target = $region33
    $region32: #{mlp_forward.1} parent=1 // pred_region
      %50 = dma.done [#allocation3], 14336
    $region33: #{mlp_forward.1} parent=1 // pred_fallthru
      _
    // Predicated region
    $region34: #{mlp_forward.1} parent=1 // pred_check
      _
    $region35: #{mlp_forward.1} parent=1 // pred_check_branch
      %52 = sbr.rel (0) target = $region37
    $region36: #{mlp_forward.1} parent=1 // pred_region
      %53 = dma.done [#allocation5], 2048
    $region37: #{mlp_forward.1} parent=1 // pred_fallthru
      _
    %v55 = vld [vmem:[%s0] sm:$0xff]
    %v56 = vld [vmem:[%s0 + $0x8] sm:$0xff]
    %v57 = vld [vmem:[%s0 + $0x10] sm:$0xff]
    %v58 = vld [vmem:[%s0 + $0x18] sm:$0xf]
    %v59 = vld [vmem:[#allocation2] sm:$0xff]
    %v60 = vld [vmem:[#allocation2 + $0x8] sm:$0xff]
    %v61 = vld [vmem:[#allocation2 + $0x10] sm:$0xff]
    %v62 = vld [vmem:[#allocation2 + $0x18] sm:$0xff]
    %v63 = vld [vmem:[#allocation2 + $0x20] sm:$0xff]
    %v64 = vld [vmem:[#allocation2 + $0x28] sm:$0xff]
    %v65 = vld [vmem:[#allocation2 + $0x30] sm:$0xff]
    %v66 = vld [vmem:[#allocation2 + $0x38] sm:$0xff]
    %v67 = vld [vmem:[#allocation2 + $0x40] sm:$0xff]
    %v68 = vld [vmem:[#allocation2 + $0x48] sm:$0xff]
    %v69 = vld [vmem:[#allocation2 + $0x50] sm:$0xff]
    %v70 = vld [vmem:[#allocation2 + $0x58] sm:$0xff]
    %v71 = vld [vmem:[#allocation2 + $0x60] sm:$0xff]
    %v72 = vld [vmem:[#allocation2 + $0x68] sm:$0xff]
    %v73 = vld [vmem:[#allocation2 + $0x70] sm:$0xff]
    %v74 = vld [vmem:[#allocation2 + $0x78] sm:$0xff]
    %v75 = vld [vmem:[#allocation2 + $0x80] sm:$0xff]
    %v76 = vld [vmem:[#allocation2 + $0x88] sm:$0xff]
    %v77 = vld [vmem:[#allocation2 + $0x90] sm:$0xff]
    %v78 = vld [vmem:[#allocation2 + $0x98] sm:$0xff]
    %v79 = vld [vmem:[#allocation2 + $0xa0] sm:$0xff]
    %v80 = vld [vmem:[#allocation2 + $0xa8] sm:$0xff]
    %v81 = vld [vmem:[#allocation2 + $0xb0] sm:$0xff]
    %v82 = vld [vmem:[#allocation2 + $0xb8] sm:$0xff]
    %v83 = vld [vmem:[#allocation2 + $0xc0] sm:$0xff]
    %v84 = vld [vmem:[#allocation2 + $0xc8] sm:$0xff]
    %v85 = vld [vmem:[#allocation2 + $0xd0] sm:$0xff]
    %v86 = vld [vmem:[#allocation2 + $0xd8] sm:$0xff]
    %v87 = vld [vmem:[#allocation2 + $0xe0] sm:$0xff]
    %v88 = vld [vmem:[#allocation2 + $0xe8] sm:$0xff]
    %v89 = vld [vmem:[#allocation2 + $0xf0] sm:$0xff]
    %v90 = vld [vmem:[#allocation2 + $0xf8] sm:$0xff]
    %v91 = vld [vmem:[#allocation2 + $0x100] sm:$0xff]
    %v92 = vld [vmem:[#allocation2 + $0x108] sm:$0xff]
    %v93 = vld [vmem:[#allocation2 + $0x110] sm:$0xff]
    %v94 = vld [vmem:[#allocation2 + $0x118] sm:$0xff]
    %v95 = vld [vmem:[#allocation2 + $0x120] sm:$0xff]
    %v96 = vld [vmem:[#allocation2 + $0x128] sm:$0xff]
    %v97 = vld [vmem:[#allocation2 + $0x130] sm:$0xff]
    %v98 = vld [vmem:[#allocation2 + $0x138] sm:$0xff]
    %v99 = vld [vmem:[#allocation2 + $0x140] sm:$0xff]
    %v100 = vld [vmem:[#allocation2 + $0x148] sm:$0xff]
    %v101 = vld [vmem:[#allocation2 + $0x150] sm:$0xff]
    %v102 = vld [vmem:[#allocation2 + $0x158] sm:$0xff]
    %v103 = vld [vmem:[#allocation2 + $0x160] sm:$0xff]
    %v104 = vld [vmem:[#allocation2 + $0x168] sm:$0xff]
    %v105 = vld [vmem:[#allocation2 + $0x170] sm:$0xff]
    %v106 = vld [vmem:[#allocation2 + $0x178] sm:$0xff]
    %v107 = vld [vmem:[#allocation2 + $0x180] sm:$0xff]
    %v108 = vld [vmem:[#allocation2 + $0x188] sm:$0xff]
    %v109 = vld [vmem:[#allocation2 + $0x190] sm:$0xff]
    %v110 = vld [vmem:[#allocation2 + $0x198] sm:$0xff]
    %v111 = vld [vmem:[#allocation2 + $0x1a0] sm:$0xff]
    %v112 = vld [vmem:[#allocation2 + $0x1a8] sm:$0xff]
    %v113 = vld [vmem:[#allocation2 + $0x1b0] sm:$0xff]
    %v114 = vld [vmem:[#allocation2 + $0x1b8] sm:$0xff]
    %v115 = vld [vmem:[#allocation2 + $0x1c0] sm:$0xff]
    %v116 = vld [vmem:[#allocation2 + $0x1c8] sm:$0xff]
    %v117 = vld [vmem:[#allocation2 + $0x1d0] sm:$0xff]
    %v118 = vld [vmem:[#allocation2 + $0x1d8] sm:$0xff]
    %v119 = vld [vmem:[#allocation2 + $0x1e0] sm:$0xff]
    %v120 = vld [vmem:[#allocation2 + $0x1e8] sm:$0xff]
    %v121 = vld [vmem:[#allocation2 + $0x1f0] sm:$0xff]
    %v122 = vld [vmem:[#allocation2 + $0x1f8] sm:$0xff]
    %v123 = vld [vmem:[#allocation2 + $0x200] sm:$0xff]
    %v124 = vld [vmem:[#allocation2 + $0x208] sm:$0xff]
    %v125 = vld [vmem:[#allocation2 + $0x210] sm:$0xff]
    %v126 = vld [vmem:[#allocation2 + $0x218] sm:$0xff]
    %v127 = vld [vmem:[#allocation2 + $0x220] sm:$0xff]
    %v128 = vld [vmem:[#allocation2 + $0x228] sm:$0xff]
    %v129 = vld [vmem:[#allocation2 + $0x230] sm:$0xff]
    %v130 = vld [vmem:[#allocation2 + $0x238] sm:$0xff]
    %v131 = vld [vmem:[#allocation2 + $0x240] sm:$0xff]
    %v132 = vld [vmem:[#allocation2 + $0x248] sm:$0xff]
    %v133 = vld [vmem:[#allocation2 + $0x250] sm:$0xff]
    %v134 = vld [vmem:[#allocation2 + $0x258] sm:$0xff]
    %v135 = vld [vmem:[#allocation2 + $0x260] sm:$0xff]
    %v136 = vld [vmem:[#allocation2 + $0x268] sm:$0xff]
    %v137 = vld [vmem:[#allocation2 + $0x270] sm:$0xff]
    %v138 = vld [vmem:[#allocation2 + $0x278] sm:$0xff]
    %v139 = vld [vmem:[#allocation2 + $0x280] sm:$0xff]
    %v140 = vld [vmem:[#allocation2 + $0x288] sm:$0xff]
    %v141 = vld [vmem:[#allocation2 + $0x290] sm:$0xff]
    %v142 = vld [vmem:[#allocation2 + $0x298] sm:$0xff]
    %v143 = vld [vmem:[#allocation2 + $0x2a0] sm:$0xff]
    %v144 = vld [vmem:[#allocation2 + $0x2a8] sm:$0xff]
    %v145 = vld [vmem:[#allocation2 + $0x2b0] sm:$0xff]
    %v146 = vld [vmem:[#allocation2 + $0x2b8] sm:$0xff]
    %v147 = vld [vmem:[#allocation2 + $0x2c0] sm:$0xff]
    %v148 = vld [vmem:[#allocation2 + $0x2c8] sm:$0xff]
    %v149 = vld [vmem:[#allocation2 + $0x2d0] sm:$0xff]
    %v150 = vld [vmem:[#allocation2 + $0x2d8] sm:$0xff]
    %v151 = vld [vmem:[#allocation2 + $0x2e0] sm:$0xff]
    %v152 = vld [vmem:[#allocation2 + $0x2e8] sm:$0xff]
    %v153 = vld [vmem:[#allocation2 + $0x2f0] sm:$0xff]
    %v154 = vld [vmem:[#allocation2 + $0x2f8] sm:$0xff]
    %v155 = vld [vmem:[#allocation2 + $0x300] sm:$0xff]
    %v156 = vld [vmem:[#allocation2 + $0x308] sm:$0xff]
    %v157 = vld [vmem:[#allocation2 + $0x310] sm:$0xff]
    %v158 = vld [vmem:[#allocation2 + $0x318] sm:$0xff]
    %v159 = vld [vmem:[#allocation2 + $0x320] sm:$0xff]
    %v160 = vld [vmem:[#allocation2 + $0x328] sm:$0xff]
    %v161 = vld [vmem:[#allocation2 + $0x330] sm:$0xff]
    %v162 = vld [vmem:[#allocation2 + $0x338] sm:$0xff]
    %v163 = vld [vmem:[#allocation2 + $0x340] sm:$0xff]
    %v164 = vld [vmem:[#allocation2 + $0x348] sm:$0xff]
    %v165 = vld [vmem:[#allocation2 + $0x350] sm:$0xff]
    %v166 = vld [vmem:[#allocation2 + $0x358] sm:$0xff]
    %v167 = vld [vmem:[#allocation2 + $0x360] sm:$0xff]
    %v168 = vld [vmem:[#allocation2 + $0x368] sm:$0xff]
    %v169 = vld [vmem:[#allocation2 + $0x370] sm:$0xff]
    %v170 = vld [vmem:[#allocation2 + $0x378] sm:$0xff]
    %v171 = vld [vmem:[%s2] sm:$0x3]
    %v173 = vlaneseq
    %v174 = vshrl.u32 %v173, 7
    %v175 = vsub.s32 0, %v174
    %v176 = vrot.slane %v171, %v175
    %v177 = vlaneseq
    %v178 = vshrl.u32 %v177, 7
    %v179 = vsub.s32 1, %v178
    %v180 = vrot.slane %v171, %v179
    %v187 = vunpack.c.l.b16 %v55
    %v188 = vunpack.c.h.b16 %v55
    %v189 = vunpack.c.l.b16 %v56
    %v190 = vunpack.c.h.b16 %v56
    %v191 = vunpack.c.l.b16 %v57
    %v192 = vunpack.c.h.b16 %v57
    %v193 = vunpack.c.l.b16 %v58
    %v194 = vpack.c.b16 %v187, %v187
    %v195 = vpack.c.b16 %v188, %v188
    %v196 = vpack.c.b16 %v189, %v189
    %v197 = vpack.c.b16 %v190, %v190
    %v198 = vpack.c.b16 %v191, %v191
    %v199 = vpack.c.b16 %v192, %v192
    %v200 = vpack.c.b16 %v193, %v193
    %v320 = vunpack.c.l.b16 %v59
    %v321 = vunpack.c.h.b16 %v59
    %v322 = vunpack.c.l.b16 %v60
    %v323 = vunpack.c.h.b16 %v60
    %v324 = vunpack.c.l.b16 %v61
    %v325 = vunpack.c.h.b16 %v61
    %v326 = vunpack.c.l.b16 %v62
    %v327 = vunpack.c.h.b16 %v62
    %v328 = vunpack.c.l.b16 %v63
    %v329 = vunpack.c.h.b16 %v63
    %v330 = vunpack.c.l.b16 %v64
    %v331 = vunpack.c.h.b16 %v64
    %v332 = vunpack.c.l.b16 %v65
    %v333 = vunpack.c.h.b16 %v65
    %v334 = vunpack.c.l.b16 %v66
    %v335 = vunpack.c.h.b16 %v66
    %v336 = vunpack.c.l.b16 %v67
    %v337 = vunpack.c.h.b16 %v67
    %v338 = vunpack.c.l.b16 %v68
    %v339 = vunpack.c.h.b16 %v68
    %v340 = vunpack.c.l.b16 %v69
    %v341 = vunpack.c.h.b16 %v69
    %v342 = vunpack.c.l.b16 %v70
    %v343 = vunpack.c.h.b16 %v70
    %v344 = vunpack.c.l.b16 %v71
    %v345 = vunpack.c.h.b16 %v71
    %v346 = vunpack.c.l.b16 %v72
    %v347 = vunpack.c.h.b16 %v72
    %v348 = vunpack.c.l.b16 %v73
    %v349 = vunpack.c.h.b16 %v73
    %v350 = vunpack.c.l.b16 %v74
    %v351 = vunpack.c.h.b16 %v74
    %v352 = vunpack.c.l.b16 %v75
    %v353 = vunpack.c.h.b16 %v75
    %v354 = vunpack.c.l.b16 %v76
    %v355 = vunpack.c.h.b16 %v76
    %v356 = vunpack.c.l.b16 %v77
    %v357 = vunpack.c.h.b16 %v77
    %v358 = vunpack.c.l.b16 %v78
    %v359 = vunpack.c.h.b16 %v78
    %v360 = vunpack.c.l.b16 %v79
    %v361 = vunpack.c.h.b16 %v79
    %v362 = vunpack.c.l.b16 %v80
    %v363 = vunpack.c.h.b16 %v80
    %v364 = vunpack.c.l.b16 %v81
    %v365 = vunpack.c.h.b16 %v81
    %v366 = vunpack.c.l.b16 %v82
    %v367 = vunpack.c.h.b16 %v82
    %v368 = vunpack.c.l.b16 %v83
    %v369 = vunpack.c.h.b16 %v83
    %v370 = vunpack.c.l.b16 %v84
    %v371 = vunpack.c.h.b16 %v84
    %v372 = vunpack.c.l.b16 %v85
    %v373 = vunpack.c.h.b16 %v85
    %v374 = vunpack.c.l.b16 %v86
    %v375 = vunpack.c.h.b16 %v86
    %v376 = vunpack.c.l.b16 %v87
    %v377 = vunpack.c.h.b16 %v87
    %v378 = vunpack.c.l.b16 %v88
    %v379 = vunpack.c.h.b16 %v88
    %v380 = vunpack.c.l.b16 %v89
    %v381 = vunpack.c.h.b16 %v89
    %v382 = vunpack.c.l.b16 %v90
    %v383 = vunpack.c.h.b16 %v90
    %v384 = vunpack.c.l.b16 %v91
    %v385 = vunpack.c.h.b16 %v91
    %v386 = vunpack.c.l.b16 %v92
    %v387 = vunpack.c.h.b16 %v92
    %v388 = vunpack.c.l.b16 %v93
    %v389 = vunpack.c.h.b16 %v93
    %v390 = vunpack.c.l.b16 %v94
    %v391 = vunpack.c.h.b16 %v94
    %v392 = vunpack.c.l.b16 %v95
    %v393 = vunpack.c.h.b16 %v95
    %v394 = vunpack.c.l.b16 %v96
    %v395 = vunpack.c.h.b16 %v96
    %v396 = vunpack.c.l.b16 %v97
    %v397 = vunpack.c.h.b16 %v97
    %v398 = vunpack.c.l.b16 %v98
    %v399 = vunpack.c.h.b16 %v98
    %v400 = vunpack.c.l.b16 %v99
    %v401 = vunpack.c.h.b16 %v99
    %v402 = vunpack.c.l.b16 %v100
    %v403 = vunpack.c.h.b16 %v100
    %v404 = vunpack.c.l.b16 %v101
    %v405 = vunpack.c.h.b16 %v101
    %v406 = vunpack.c.l.b16 %v102
    %v407 = vunpack.c.h.b16 %v102
    %v408 = vunpack.c.l.b16 %v103
    %v409 = vunpack.c.h.b16 %v103
    %v410 = vunpack.c.l.b16 %v104
    %v411 = vunpack.c.h.b16 %v104
    %v412 = vunpack.c.l.b16 %v105
    %v413 = vunpack.c.h.b16 %v105
    %v414 = vunpack.c.l.b16 %v106
    %v415 = vunpack.c.h.b16 %v106
    %v416 = vunpack.c.l.b16 %v107
    %v417 = vunpack.c.h.b16 %v107
    %v418 = vunpack.c.l.b16 %v108
    %v419 = vunpack.c.h.b16 %v108
    %v420 = vunpack.c.l.b16 %v109
    %v421 = vunpack.c.h.b16 %v109
    %v422 = vunpack.c.l.b16 %v110
    %v423 = vunpack.c.h.b16 %v110
    %v424 = vunpack.c.l.b16 %v111
    %v425 = vunpack.c.h.b16 %v111
    %v426 = vunpack.c.l.b16 %v112
    %v427 = vunpack.c.h.b16 %v112
    %v428 = vunpack.c.l.b16 %v113
    %v429 = vunpack.c.h.b16 %v113
    %v430 = vunpack.c.l.b16 %v114
    %v431 = vunpack.c.h.b16 %v114
    %v432 = vunpack.c.l.b16 %v115
    %v433 = vunpack.c.h.b16 %v115
    %v434 = vunpack.c.l.b16 %v116
    %v435 = vunpack.c.h.b16 %v116
    %v436 = vunpack.c.l.b16 %v117
    %v437 = vunpack.c.h.b16 %v117
    %v438 = vunpack.c.l.b16 %v118
    %v439 = vunpack.c.h.b16 %v118
    %v440 = vunpack.c.l.b16 %v119
    %v441 = vunpack.c.h.b16 %v119
    %v442 = vunpack.c.l.b16 %v120
    %v443 = vunpack.c.h.b16 %v120
    %v444 = vunpack.c.l.b16 %v121
    %v445 = vunpack.c.h.b16 %v121
    %v446 = vunpack.c.l.b16 %v122
    %v447 = vunpack.c.h.b16 %v122
    %v448 = vunpack.c.l.b16 %v123
    %v449 = vunpack.c.h.b16 %v123
    %v450 = vunpack.c.l.b16 %v124
    %v451 = vunpack.c.h.b16 %v124
    %v452 = vunpack.c.l.b16 %v125
    %v453 = vunpack.c.h.b16 %v125
    %v454 = vunpack.c.l.b16 %v126
    %v455 = vunpack.c.h.b16 %v126
    %v456 = vunpack.c.l.b16 %v127
    %v457 = vunpack.c.h.b16 %v127
    %v458 = vunpack.c.l.b16 %v128
    %v459 = vunpack.c.h.b16 %v128
    %v460 = vunpack.c.l.b16 %v129
    %v461 = vunpack.c.h.b16 %v129
    %v462 = vunpack.c.l.b16 %v130
    %v463 = vunpack.c.h.b16 %v130
    %v464 = vunpack.c.l.b16 %v131
    %v465 = vunpack.c.h.b16 %v131
    %v466 = vunpack.c.l.b16 %v132
    %v467 = vunpack.c.h.b16 %v132
    %v468 = vunpack.c.l.b16 %v133
    %v469 = vunpack.c.h.b16 %v133
    %v470 = vunpack.c.l.b16 %v134
    %v471 = vunpack.c.h.b16 %v134
    %v472 = vunpack.c.l.b16 %v135
    %v473 = vunpack.c.h.b16 %v135
    %v474 = vunpack.c.l.b16 %v136
    %v475 = vunpack.c.h.b16 %v136
    %v476 = vunpack.c.l.b16 %v137
    %v477 = vunpack.c.h.b16 %v137
    %v478 = vunpack.c.l.b16 %v138
    %v479 = vunpack.c.h.b16 %v138
    %v480 = vunpack.c.l.b16 %v139
    %v481 = vunpack.c.h.b16 %v139
    %v482 = vunpack.c.l.b16 %v140
    %v483 = vunpack.c.h.b16 %v140
    %v484 = vunpack.c.l.b16 %v141
    %v485 = vunpack.c.h.b16 %v141
    %v486 = vunpack.c.l.b16 %v142
    %v487 = vunpack.c.h.b16 %v142
    %v488 = vunpack.c.l.b16 %v143
    %v489 = vunpack.c.h.b16 %v143
    %v490 = vunpack.c.l.b16 %v144
    %v491 = vunpack.c.h.b16 %v144
    %v492 = vunpack.c.l.b16 %v145
    %v493 = vunpack.c.h.b16 %v145
    %v494 = vunpack.c.l.b16 %v146
    %v495 = vunpack.c.h.b16 %v146
    %v496 = vunpack.c.l.b16 %v147
    %v497 = vunpack.c.h.b16 %v147
    %v498 = vunpack.c.l.b16 %v148
    %v499 = vunpack.c.h.b16 %v148
    %v500 = vunpack.c.l.b16 %v149
    %v501 = vunpack.c.h.b16 %v149
    %v502 = vunpack.c.l.b16 %v150
    %v503 = vunpack.c.h.b16 %v150
    %v504 = vunpack.c.l.b16 %v151
    %v505 = vunpack.c.h.b16 %v151
    %v506 = vunpack.c.l.b16 %v152
    %v507 = vunpack.c.h.b16 %v152
    %v508 = vunpack.c.l.b16 %v153
    %v509 = vunpack.c.h.b16 %v153
    %v510 = vunpack.c.l.b16 %v154
    %v511 = vunpack.c.h.b16 %v154
    %v512 = vunpack.c.l.b16 %v155
    %v513 = vunpack.c.h.b16 %v155
    %v514 = vunpack.c.l.b16 %v156
    %v515 = vunpack.c.h.b16 %v156
    %v516 = vunpack.c.l.b16 %v157
    %v517 = vunpack.c.h.b16 %v157
    %v518 = vunpack.c.l.b16 %v158
    %v519 = vunpack.c.h.b16 %v158
    %v520 = vunpack.c.l.b16 %v159
    %v521 = vunpack.c.h.b16 %v159
    %v522 = vunpack.c.l.b16 %v160
    %v523 = vunpack.c.h.b16 %v160
    %v524 = vunpack.c.l.b16 %v161
    %v525 = vunpack.c.h.b16 %v161
    %v526 = vunpack.c.l.b16 %v162
    %v527 = vunpack.c.h.b16 %v162
    %v528 = vunpack.c.l.b16 %v163
    %v529 = vunpack.c.h.b16 %v163
    %v530 = vunpack.c.l.b16 %v164
    %v531 = vunpack.c.h.b16 %v164
    %v532 = vunpack.c.l.b16 %v165
    %v533 = vunpack.c.h.b16 %v165
    %v534 = vunpack.c.l.b16 %v166
    %v535 = vunpack.c.h.b16 %v166
    %v536 = vunpack.c.l.b16 %v167
    %v537 = vunpack.c.h.b16 %v167
    %v538 = vunpack.c.l.b16 %v168
    %v539 = vunpack.c.h.b16 %v168
    %v540 = vunpack.c.l.b16 %v169
    %v541 = vunpack.c.h.b16 %v169
    %v542 = vunpack.c.l.b16 %v170
    %v543 = vunpack.c.h.b16 %v170
    %v544 = vpack.c.b16 %v322, %v320
    %v545 = vpack.c.b16 %v323, %v321
    %v546 = vpack.c.b16 %v326, %v324
    %v547 = vpack.c.b16 %v327, %v325
    %v548 = vpack.c.b16 %v330, %v328
    %v549 = vpack.c.b16 %v331, %v329
    %v550 = vpack.c.b16 %v334, %v332
    %v551 = vpack.c.b16 %v335, %v333
    %v552 = vpack.c.b16 %v338, %v336
    %v553 = vpack.c.b16 %v339, %v337
    %v554 = vpack.c.b16 %v342, %v340
    %v555 = vpack.c.b16 %v343, %v341
    %v556 = vpack.c.b16 %v346, %v344
    %v557 = vpack.c.b16 %v347, %v345
    %v558 = vpack.c.b16 %v350, %v348
    %v559 = vpack.c.b16 %v351, %v349
    %v560 = vpack.c.b16 %v354, %v352
    %v561 = vpack.c.b16 %v355, %v353
    %v562 = vpack.c.b16 %v358, %v356
    %v563 = vpack.c.b16 %v359, %v357
    %v564 = vpack.c.b16 %v362, %v360
    %v565 = vpack.c.b16 %v363, %v361
    %v566 = vpack.c.b16 %v366, %v364
    %v567 = vpack.c.b16 %v367, %v365
    %v568 = vpack.c.b16 %v370, %v368
    %v569 = vpack.c.b16 %v371, %v369
    %v570 = vpack.c.b16 %v374, %v372
    %v571 = vpack.c.b16 %v375, %v373
    %v572 = vpack.c.b16 %v378, %v376
    %v573 = vpack.c.b16 %v379, %v377
    %v574 = vpack.c.b16 %v382, %v380
    %v575 = vpack.c.b16 %v383, %v381
    %v576 = vpack.c.b16 %v386, %v384
    %v577 = vpack.c.b16 %v387, %v385
    %v578 = vpack.c.b16 %v390, %v388
    %v579 = vpack.c.b16 %v391, %v389
    %v580 = vpack.c.b16 %v394, %v392
    %v581 = vpack.c.b16 %v395, %v393
    %v582 = vpack.c.b16 %v398, %v396
    %v583 = vpack.c.b16 %v399, %v397
    %v584 = vpack.c.b16 %v402, %v400
    %v585 = vpack.c.b16 %v403, %v401
    %v586 = vpack.c.b16 %v406, %v404
    %v587 = vpack.c.b16 %v407, %v405
    %v588 = vpack.c.b16 %v410, %v408
    %v589 = vpack.c.b16 %v411, %v409
    %v590 = vpack.c.b16 %v414, %v412
    %v591 = vpack.c.b16 %v415, %v413
    %v592 = vpack.c.b16 %v418, %v416
    %v593 = vpack.c.b16 %v419, %v417
    %v594 = vpack.c.b16 %v422, %v420
    %v595 = vpack.c.b16 %v423, %v421
    %v596 = vpack.c.b16 %v426, %v424
    %v597 = vpack.c.b16 %v427, %v425
    %v598 = vpack.c.b16 %v430, %v428
    %v599 = vpack.c.b16 %v431, %v429
    %v600 = vpack.c.b16 %v434, %v432
    %v601 = vpack.c.b16 %v435, %v433
    %v602 = vpack.c.b16 %v438, %v436
    %v603 = vpack.c.b16 %v439, %v437
    %v604 = vpack.c.b16 %v442, %v440
    %v605 = vpack.c.b16 %v443, %v441
    %v606 = vpack.c.b16 %v446, %v444
    %v607 = vpack.c.b16 %v447, %v445
    %v608 = vpack.c.b16 %v450, %v448
    %v609 = vpack.c.b16 %v451, %v449
    %v610 = vpack.c.b16 %v454, %v452
    %v611 = vpack.c.b16 %v455, %v453
    %v612 = vpack.c.b16 %v458, %v456
    %v613 = vpack.c.b16 %v459, %v457
    %v614 = vpack.c.b16 %v462, %v460
    %v615 = vpack.c.b16 %v463, %v461
    %v616 = vpack.c.b16 %v466, %v464
    %v617 = vpack.c.b16 %v467, %v465
    %v618 = vpack.c.b16 %v470, %v468
    %v619 = vpack.c.b16 %v471, %v469
    %v620 = vpack.c.b16 %v474, %v472
    %v621 = vpack.c.b16 %v475, %v473
    %v622 = vpack.c.b16 %v478, %v476
    %v623 = vpack.c.b16 %v479, %v477
    %v624 = vpack.c.b16 %v482, %v480
    %v625 = vpack.c.b16 %v483, %v481
    %v626 = vpack.c.b16 %v486, %v484
    %v627 = vpack.c.b16 %v487, %v485
    %v628 = vpack.c.b16 %v490, %v488
    %v629 = vpack.c.b16 %v491, %v489
    %v630 = vpack.c.b16 %v494, %v492
    %v631 = vpack.c.b16 %v495, %v493
    %v632 = vpack.c.b16 %v498, %v496
    %v633 = vpack.c.b16 %v499, %v497
    %v634 = vpack.c.b16 %v502, %v500
    %v635 = vpack.c.b16 %v503, %v501
    %v636 = vpack.c.b16 %v506, %v504
    %v637 = vpack.c.b16 %v507, %v505
    %v638 = vpack.c.b16 %v510, %v508
    %v639 = vpack.c.b16 %v511, %v509
    %v640 = vpack.c.b16 %v514, %v512
    %v641 = vpack.c.b16 %v515, %v513
    %v642 = vpack.c.b16 %v518, %v516
    %v643 = vpack.c.b16 %v519, %v517
    %v644 = vpack.c.b16 %v522, %v520
    %v645 = vpack.c.b16 %v523, %v521
    %v646 = vpack.c.b16 %v526, %v524
    %v647 = vpack.c.b16 %v527, %v525
    %v648 = vpack.c.b16 %v530, %v528
    %v649 = vpack.c.b16 %v531, %v529
    %v650 = vpack.c.b16 %v534, %v532
    %v651 = vpack.c.b16 %v535, %v533
    %v652 = vpack.c.b16 %v538, %v536
    %v653 = vpack.c.b16 %v539, %v537
    %v654 = vpack.c.b16 %v542, %v540
    %v655 = vpack.c.b16 %v543, %v541
    %768 = vmatprep.subr.bf16.mxu0 %v545
    %769 = vmatpush1.bf16.msra.mxu0 %v544
    %770 = vmatprep.subr.bf16.mxu0 %v547
    %771 = vmatpush1.bf16.msra.mxu0 %v546
    %772 = vmatprep.subr.bf16.mxu0 %v549
    %773 = vmatpush1.bf16.msra.mxu0 %v548
    %774 = vmatprep.subr.bf16.mxu0 %v551
    %775 = vmatpush1.bf16.msra.mxu0 %v550
    %776 = vmatprep.subr.bf16.mxu0 %v553
    %777 = vmatpush1.bf16.msra.mxu0 %v552
    %778 = vmatprep.subr.bf16.mxu0 %v555
    %779 = vmatpush1.bf16.msra.mxu0 %v554
    %780 = vmatprep.subr.bf16.mxu0 %v557
    %781 = vmatpush1.bf16.msra.mxu0 %v556
    %782 = vmatprep.subr.bf16.mxu0 %v559
    %783 = vmatpush1.bf16.msra.mxu0 %v558
    %784 = vmatprep.subr.bf16.mxu0 %v561
    %785 = vmatpush1.bf16.msra.mxu0 %v560
    %786 = vmatprep.subr.bf16.mxu0 %v563
    %787 = vmatpush1.bf16.msra.mxu0 %v562
    %788 = vmatprep.subr.bf16.mxu0 %v565
    %789 = vmatpush1.bf16.msra.mxu0 %v564
    %790 = vmatprep.subr.bf16.mxu0 %v567
    %791 = vmatpush1.bf16.msra.mxu0 %v566
    %792 = vmatprep.subr.bf16.mxu0 %v569
    %793 = vmatpush1.bf16.msra.mxu0 %v568
    %794 = vmatprep.subr.bf16.mxu0 %v571
    %795 = vmatpush1.bf16.msra.mxu0 %v570
    %796 = vmatprep.subr.bf16.mxu0 %v573
    %797 = vmatpush1.bf16.msra.mxu0 %v572
    %798 = vmatprep.subr.bf16.mxu0 %v575
    %799 = vmatpush1.bf16.msra.mxu0 %v574
    %800 = vmatprep.mubr.bf16.mxu0 %v195
    %801 = vmatmul.mubr.bf16.gmra.mrb[0].mxu0 %v194
    %v802 = vpop.f32.mrb[0].mxu0
    %v803 = vadd.f32 %v176, %v802
    %v804 = vpop.f32.mrb[0].mxu0
    %v805 = vadd.f32 %v180, %v804
    %v806 = vpop.f32.mrb[0].mxu0
    %v807 = vpop.f32.mrb[0].mxu0
    %808 = vdwg.mxu0
    %809 = vmatprep.subr.bf16.mxu0 %v577
    %810 = vmatpush1.bf16.msra.mxu0 %v576
    %811 = vmatprep.subr.bf16.mxu0 %v579
    %812 = vmatpush1.bf16.msra.mxu0 %v578
    %813 = vmatprep.subr.bf16.mxu0 %v581
    %814 = vmatpush1.bf16.msra.mxu0 %v580
    %815 = vmatprep.subr.bf16.mxu0 %v583
    %816 = vmatpush1.bf16.msra.mxu0 %v582
    %817 = vmatprep.subr.bf16.mxu0 %v585
    %818 = vmatpush1.bf16.msra.mxu0 %v584
    %819 = vmatprep.subr.bf16.mxu0 %v587
    %820 = vmatpush1.bf16.msra.mxu0 %v586
    %821 = vmatprep.subr.bf16.mxu0 %v589
    %822 = vmatpush1.bf16.msra.mxu0 %v588
    %823 = vmatprep.subr.bf16.mxu0 %v591
    %824 = vmatpush1.bf16.msra.mxu0 %v590
    %825 = vmatprep.subr.bf16.mxu0 %v593
    %826 = vmatpush1.bf16.msra.mxu0 %v592
    %827 = vmatprep.subr.bf16.mxu0 %v595
    %828 = vmatpush1.bf16.msra.mxu0 %v594
    %829 = vmatprep.subr.bf16.mxu0 %v597
    %830 = vmatpush1.bf16.msra.mxu0 %v596
    %831 = vmatprep.subr.bf16.mxu0 %v599
    %832 = vmatpush1.bf16.msra.mxu0 %v598
    %833 = vmatprep.subr.bf16.mxu0 %v601
    %834 = vmatpush1.bf16.msra.mxu0 %v600
    %835 = vmatprep.subr.bf16.mxu0 %v603
    %836 = vmatpush1.bf16.msra.mxu0 %v602
    %837 = vmatprep.subr.bf16.mxu0 %v605
    %838 = vmatpush1.bf16.msra.mxu0 %v604
    %839 = vmatprep.subr.bf16.mxu0 %v607
    %840 = vmatpush1.bf16.msra.mxu0 %v606
    %841 = vmatprep.mubr.bf16.mxu0 %v197
    %842 = vmatmul.mubr.bf16.gmra.mrb[0].mxu0 %v196
    %v843 = vpop.f32.mrb[0].mxu0
    %v844 = vadd.f32 %v803, %v843
    %v845 = vpop.f32.mrb[0].mxu0
    %v846 = vadd.f32 %v805, %v845
    %v847 = vpop.f32.mrb[0].mxu0
    %v848 = vpop.f32.mrb[0].mxu0
    %849 = vdwg.mxu0
    %850 = vmatprep.subr.bf16.mxu0 %v609
    %851 = vmatpush1.bf16.msra.mxu0 %v608
    %852 = vmatprep.subr.bf16.mxu0 %v611
    %853 = vmatpush1.bf16.msra.mxu0 %v610
    %854 = vmatprep.subr.bf16.mxu0 %v613
    %855 = vmatpush1.bf16.msra.mxu0 %v612
    %856 = vmatprep.subr.bf16.mxu0 %v615
    %857 = vmatpush1.bf16.msra.mxu0 %v614
    %858 = vmatprep.subr.bf16.mxu0 %v617
    %859 = vmatpush1.bf16.msra.mxu0 %v616
    %860 = vmatprep.subr.bf16.mxu0 %v619
    %861 = vmatpush1.bf16.msra.mxu0 %v618
    %862 = vmatprep.subr.bf16.mxu0 %v621
    %863 = vmatpush1.bf16.msra.mxu0 %v620
    %864 = vmatprep.subr.bf16.mxu0 %v623
    %865 = vmatpush1.bf16.msra.mxu0 %v622
    %866 = vmatprep.subr.bf16.mxu0 %v625
    %867 = vmatpush1.bf16.msra.mxu0 %v624
    %868 = vmatprep.subr.bf16.mxu0 %v627
    %869 = vmatpush1.bf16.msra.mxu0 %v626
    %870 = vmatprep.subr.bf16.mxu0 %v629
    %871 = vmatpush1.bf16.msra.mxu0 %v628
    %872 = vmatprep.subr.bf16.mxu0 %v631
    %873 = vmatpush1.bf16.msra.mxu0 %v630
    %874 = vmatprep.subr.bf16.mxu0 %v633
    %875 = vmatpush1.bf16.msra.mxu0 %v632
    %876 = vmatprep.subr.bf16.mxu0 %v635
    %877 = vmatpush1.bf16.msra.mxu0 %v634
    %878 = vmatprep.subr.bf16.mxu0 %v637
    %879 = vmatpush1.bf16.msra.mxu0 %v636
    %880 = vmatprep.subr.bf16.mxu0 %v639
    %881 = vmatpush1.bf16.msra.mxu0 %v638
    %882 = vmatprep.mubr.bf16.mxu0 %v199
    %883 = vmatmul.mubr.bf16.gmra.mrb[0].mxu0 %v198
    %v884 = vpop.f32.mrb[0].mxu0
    %v885 = vadd.f32 %v844, %v884
    %v886 = vpop.f32.mrb[0].mxu0
    %v887 = vadd.f32 %v846, %v886
    %v888 = vpop.f32.mrb[0].mxu0
    %v889 = vpop.f32.mrb[0].mxu0
    %890 = vdwg.mxu0
    %891 = vmatprep.subr.bf16.mxu0 %v641
    %892 = vmatpush1.bf16.msra.mxu0 %v640
    %893 = vmatprep.subr.bf16.mxu0 %v643
    %894 = vmatpush1.bf16.msra.mxu0 %v642
    %895 = vmatprep.subr.bf16.mxu0 %v645
    %896 = vmatpush1.bf16.msra.mxu0 %v644
    %897 = vmatprep.subr.bf16.mxu0 %v647
    %898 = vmatpush1.bf16.msra.mxu0 %v646
    %899 = vmatprep.subr.bf16.mxu0 %v649
    %900 = vmatpush1.bf16.msra.mxu0 %v648
    %901 = vmatprep.subr.bf16.mxu0 %v651
    %902 = vmatpush1.bf16.msra.mxu0 %v650
    %903 = vmatprep.subr.bf16.mxu0 %v653
    %904 = vmatpush1.bf16.msra.mxu0 %v652
    %905 = vmatprep.subr.bf16.mxu0 %v655
    %906 = vmatpush1.bf16.msra.mxu0 %v654
    %907 = vmatprep.subr.bf16.mxu0 0
    %908 = vmatpush1.bf16.msra.mxu0 0
    %909 = vmatprep.subr.bf16.mxu0 0
    %910 = vmatpush1.bf16.msra.mxu0 0
    %911 = vmatprep.subr.bf16.mxu0 0
    %912 = vmatpush1.bf16.msra.mxu0 0
    %913 = vmatprep.subr.bf16.mxu0 0
    %914 = vmatpush1.bf16.msra.mxu0 0
    %915 = vmatprep.subr.bf16.mxu0 0
    %916 = vmatpush1.bf16.msra.mxu0 0
    %917 = vmatprep.subr.bf16.mxu0 0
    %918 = vmatpush1.bf16.msra.mxu0 0
    %919 = vmatprep.subr.bf16.mxu0 0
    %920 = vmatpush1.bf16.msra.mxu0 0
    %921 = vmatprep.subr.bf16.mxu0 0
    %922 = vmatpush1.bf16.msra.mxu0 0
    %923 = vmatprep.mubr.bf16.mxu0 0
    %924 = vmatmul.mubr.bf16.gmra.mrb[0].mxu0 %v200
    %v925 = vpop.f32.mrb[0].mxu0
    %v926 = vadd.f32 %v885, %v925
    %v927 = vpop.f32.mrb[0].mxu0
    %v928 = vadd.f32 %v887, %v927
    %v929 = vpop.f32.mrb[0].mxu0
    %v930 = vpop.f32.mrb[0].mxu0
    %931 = vdwg.mxu0
    %v932 = vmax.f32 %v926, 0.0
    %v933 = vmax.f32 %v928, 0.0
    %v934 = vpack.c.bf16 %v932, %v932
    %v935 = vpack.c.bf16 %v933, %v933
    %v936 = vld [vmem:[#allocation4] sm:$0xf]
    %v937 = vld [vmem:[#allocation4 + $0x4] sm:$0xf]
    %v938 = vld [vmem:[#allocation4 + $0x8] sm:$0xf]
    %v939 = vld [vmem:[#allocation4 + $0xc] sm:$0xf]
    %v940 = vld [vmem:[#allocation4 + $0x10] sm:$0xf]
    %v941 = vld [vmem:[#allocation4 + $0x14] sm:$0xf]
    %v942 = vld [vmem:[#allocation4 + $0x18] sm:$0xf]
    %v943 = vld [vmem:[#allocation4 + $0x1c] sm:$0xf]
    %v944 = vld [vmem:[#allocation4 + $0x20] sm:$0xf]
    %v945 = vld [vmem:[#allocation4 + $0x24] sm:$0xf]
    %v946 = vld [vmem:[#allocation4 + $0x28] sm:$0xf]
    %v947 = vld [vmem:[#allocation4 + $0x2c] sm:$0xf]
    %v948 = vld [vmem:[#allocation4 + $0x30] sm:$0xf]
    %v949 = vld [vmem:[#allocation4 + $0x34] sm:$0xf]
    %v950 = vld [vmem:[#allocation4 + $0x38] sm:$0xf]
    %v951 = vld [vmem:[#allocation4 + $0x3c] sm:$0xf]
    %v952 = vld [vmem:[#allocation4 + $0x40] sm:$0xf]
    %v953 = vld [vmem:[#allocation4 + $0x44] sm:$0xf]
    %v954 = vld [vmem:[#allocation4 + $0x48] sm:$0xf]
    %v955 = vld [vmem:[#allocation4 + $0x4c] sm:$0xf]
    %v956 = vld [vmem:[#allocation4 + $0x50] sm:$0xf]
    %v957 = vld [vmem:[#allocation4 + $0x54] sm:$0xf]
    %v958 = vld [vmem:[#allocation4 + $0x58] sm:$0xf]
    %v959 = vld [vmem:[#allocation4 + $0x5c] sm:$0xf]
    %v960 = vld [vmem:[#allocation4 + $0x60] sm:$0xf]
    %v961 = vld [vmem:[#allocation4 + $0x64] sm:$0xf]
    %v962 = vld [vmem:[#allocation4 + $0x68] sm:$0xf]
    %v963 = vld [vmem:[#allocation4 + $0x6c] sm:$0xf]
    %v964 = vld [vmem:[#allocation4 + $0x70] sm:$0xf]
    %v965 = vld [vmem:[#allocation4 + $0x74] sm:$0xf]
    %v966 = vld [vmem:[#allocation4 + $0x78] sm:$0xf]
    %v967 = vld [vmem:[#allocation4 + $0x7c] sm:$0xf]
    %v968 = vld [vmem:[%s4] sm:$0x1]
    %v970 = vlaneseq
    %v971 = vshrl.u32 %v970, 7
    %v972 = vsub.s32 0, %v971
    %v973 = vrot.slane %v968, %v972
    %v1007 = vunpack.c.l.b16 %v936
    %v1008 = vunpack.c.l.b16 %v937
    %v1009 = vunpack.c.l.b16 %v938
    %v1010 = vunpack.c.l.b16 %v939
    %v1011 = vunpack.c.l.b16 %v940
    %v1012 = vunpack.c.l.b16 %v941
    %v1013 = vunpack.c.l.b16 %v942
    %v1014 = vunpack.c.l.b16 %v943
    %v1015 = vunpack.c.l.b16 %v944
    %v1016 = vunpack.c.l.b16 %v945
    %v1017 = vunpack.c.l.b16 %v946
    %v1018 = vunpack.c.l.b16 %v947
    %v1019 = vunpack.c.l.b16 %v948
    %v1020 = vunpack.c.l.b16 %v949
    %v1021 = vunpack.c.l.b16 %v950
    %v1022 = vunpack.c.l.b16 %v951
    %v1023 = vunpack.c.l.b16 %v952
    %v1024 = vunpack.c.l.b16 %v953
    %v1025 = vunpack.c.l.b16 %v954
    %v1026 = vunpack.c.l.b16 %v955
    %v1027 = vunpack.c.l.b16 %v956
    %v1028 = vunpack.c.l.b16 %v957
    %v1029 = vunpack.c.l.b16 %v958
    %v1030 = vunpack.c.l.b16 %v959
    %v1031 = vunpack.c.l.b16 %v960
    %v1032 = vunpack.c.l.b16 %v961
    %v1033 = vunpack.c.l.b16 %v962
    %v1034 = vunpack.c.l.b16 %v963
    %v1035 = vunpack.c.l.b16 %v964
    %v1036 = vunpack.c.l.b16 %v965
    %v1037 = vunpack.c.l.b16 %v966
    %v1038 = vunpack.c.l.b16 %v967
    %v1039 = vpack.c.b16 %v1008, %v1007
    %v1040 = vpack.c.b16 %v1010, %v1009
    %v1041 = vpack.c.b16 %v1012, %v1011
    %v1042 = vpack.c.b16 %v1014, %v1013
    %v1043 = vpack.c.b16 %v1016, %v1015
    %v1044 = vpack.c.b16 %v1018, %v1017
    %v1045 = vpack.c.b16 %v1020, %v1019
    %v1046 = vpack.c.b16 %v1022, %v1021
    %v1047 = vpack.c.b16 %v1024, %v1023
    %v1048 = vpack.c.b16 %v1026, %v1025
    %v1049 = vpack.c.b16 %v1028, %v1027
    %v1050 = vpack.c.b16 %v1030, %v1029
    %v1051 = vpack.c.b16 %v1032, %v1031
    %v1052 = vpack.c.b16 %v1034, %v1033
    %v1053 = vpack.c.b16 %v1036, %v1035
    %v1054 = vpack.c.b16 %v1038, %v1037
    %1071 = vmatprep.subr.bf16.mxu0 0
    %1072 = vmatpush1.bf16.msra.mxu0 %v1039
    %1073 = vmatprep.subr.bf16.mxu0 0
    %1074 = vmatpush1.bf16.msra.mxu0 %v1040
    %1075 = vmatprep.subr.bf16.mxu0 0
    %1076 = vmatpush1.bf16.msra.mxu0 %v1041
    %1077 = vmatprep.subr.bf16.mxu0 0
    %1078 = vmatpush1.bf16.msra.mxu0 %v1042
    %1079 = vmatprep.subr.bf16.mxu0 0
    %1080 = vmatpush1.bf16.msra.mxu0 %v1043
    %1081 = vmatprep.subr.bf16.mxu0 0
    %1082 = vmatpush1.bf16.msra.mxu0 %v1044
    %1083 = vmatprep.subr.bf16.mxu0 0
    %1084 = vmatpush1.bf16.msra.mxu0 %v1045
    %1085 = vmatprep.subr.bf16.mxu0 0
    %1086 = vmatpush1.bf16.msra.mxu0 %v1046
    %1087 = vmatprep.subr.bf16.mxu0 0
    %1088 = vmatpush1.bf16.msra.mxu0 %v1047
    %1089 = vmatprep.subr.bf16.mxu0 0
    %1090 = vmatpush1.bf16.msra.mxu0 %v1048
    %1091 = vmatprep.subr.bf16.mxu0 0
    %1092 = vmatpush1.bf16.msra.mxu0 %v1049
    %1093 = vmatprep.subr.bf16.mxu0 0
    %1094 = vmatpush1.bf16.msra.mxu0 %v1050
    %1095 = vmatprep.subr.bf16.mxu0 0
    %1096 = vmatpush1.bf16.msra.mxu0 %v1051
    %1097 = vmatprep.subr.bf16.mxu0 0
    %1098 = vmatpush1.bf16.msra.mxu0 %v1052
    %1099 = vmatprep.subr.bf16.mxu0 0
    %1100 = vmatpush1.bf16.msra.mxu0 %v1053
    %1101 = vmatprep.subr.bf16.mxu0 0
    %1102 = vmatpush1.bf16.msra.mxu0 %v1054
    %1103 = vmatprep.mubr.bf16.mxu0 %v935
    %1104 = vmatmul.mubr.bf16.gmra.mrb[0].mxu0 %v934
    %v1105 = vpop.f32.mrb[0].mxu0
    %v1106 = vadd.f32 %v973, %v1105
    %v1107 = vpop.f32.mrb[0].mxu0
    %v1108 = vpop.f32.mrb[0].mxu0
    %v1109 = vpop.f32.mrb[0].mxu0
    %1110 = vdwg.mxu0
    %v1111 = vmax.f32 %v1106, 0.0
    %v1112 = vpack.c.bf16 %v1111, %v1111
    %v1113 = vld [vmem:[%s5] sm:$0xf]
    %v1114 = vld [vmem:[%s5 + $0x4] sm:$0xf]
    %v1115 = vld [vmem:[%s5 + $0x8] sm:$0xf]
    %v1116 = vld [vmem:[%s5 + $0xc] sm:$0xf]
    %v1117 = vld [vmem:[%s5 + $0x10] sm:$0xf]
    %v1118 = vld [vmem:[%s5 + $0x14] sm:$0xf]
    %v1119 = vld [vmem:[%s5 + $0x18] sm:$0xf]
    %v1120 = vld [vmem:[%s5 + $0x1c] sm:$0xf]
    %v1121 = vld [vmem:[%s5 + $0x20] sm:$0xf]
    %v1122 = vld [vmem:[%s5 + $0x24] sm:$0xf]
    %v1123 = vld [vmem:[%s5 + $0x28] sm:$0xf]
    %v1124 = vld [vmem:[%s5 + $0x2c] sm:$0xf]
    %v1125 = vld [vmem:[%s5 + $0x30] sm:$0xf]
    %v1126 = vld [vmem:[%s5 + $0x34] sm:$0xf]
    %v1127 = vld [vmem:[%s5 + $0x38] sm:$0xf]
    %v1128 = vld [vmem:[%s5 + $0x3c] sm:$0xf]
    %v1129 = vld [vmem:[%s6] sm:$0x1]
    %v1131 = vlaneseq
    %v1132 = vshrl.u32 %v1131, 7
    %v1133 = vsub.s32 0, %v1132
    %v1134 = vrot.slane %v1129, %v1133
    %v1152 = vunpack.c.l.b16 %v1113
    %v1153 = vunpack.c.l.b16 %v1114
    %v1154 = vunpack.c.l.b16 %v1115
    %v1155 = vunpack.c.l.b16 %v1116
    %v1156 = vunpack.c.l.b16 %v1117
    %v1157 = vunpack.c.l.b16 %v1118
    %v1158 = vunpack.c.l.b16 %v1119
    %v1159 = vunpack.c.l.b16 %v1120
    %v1160 = vunpack.c.l.b16 %v1121
    %v1161 = vunpack.c.l.b16 %v1122
    %v1162 = vunpack.c.l.b16 %v1123
    %v1163 = vunpack.c.l.b16 %v1124
    %v1164 = vunpack.c.l.b16 %v1125
    %v1165 = vunpack.c.l.b16 %v1126
    %v1166 = vunpack.c.l.b16 %v1127
    %v1167 = vunpack.c.l.b16 %v1128
    %v1168 = vpack.c.b16 %v1153, %v1152
    %v1169 = vpack.c.b16 %v1155, %v1154
    %v1170 = vpack.c.b16 %v1157, %v1156
    %v1171 = vpack.c.b16 %v1159, %v1158
    %v1172 = vpack.c.b16 %v1161, %v1160
    %v1173 = vpack.c.b16 %v1163, %v1162
    %v1174 = vpack.c.b16 %v1165, %v1164
    %v1175 = vpack.c.b16 %v1167, %v1166
    %1184 = vmatprep.subr.bf16.mxu0 0
    %1185 = vmatpush1.bf16.msra.mxu0 %v1168
    %1186 = vmatprep.subr.bf16.mxu0 0
    %1187 = vmatpush1.bf16.msra.mxu0 %v1169
    %1188 = vmatprep.subr.bf16.mxu0 0
    %1189 = vmatpush1.bf16.msra.mxu0 %v1170
    %1190 = vmatprep.subr.bf16.mxu0 0
    %1191 = vmatpush1.bf16.msra.mxu0 %v1171
    %1192 = vmatprep.subr.bf16.mxu0 0
    %1193 = vmatpush1.bf16.msra.mxu0 %v1172
    %1194 = vmatprep.subr.bf16.mxu0 0
    %1195 = vmatpush1.bf16.msra.mxu0 %v1173
    %1196 = vmatprep.subr.bf16.mxu0 0
    %1197 = vmatpush1.bf16.msra.mxu0 %v1174
    %1198 = vmatprep.subr.bf16.mxu0 0
    %1199 = vmatpush1.bf16.msra.mxu0 %v1175
    %1200 = vmatprep.subr.bf16.mxu0 0
    %1201 = vmatpush1.bf16.msra.mxu0 0
    %1202 = vmatprep.subr.bf16.mxu0 0
    %1203 = vmatpush1.bf16.msra.mxu0 0
    %1204 = vmatprep.subr.bf16.mxu0 0
    %1205 = vmatpush1.bf16.msra.mxu0 0
    %1206 = vmatprep.subr.bf16.mxu0 0
    %1207 = vmatpush1.bf16.msra.mxu0 0
    %1208 = vmatprep.subr.bf16.mxu0 0
    %1209 = vmatpush1.bf16.msra.mxu0 0
    %1210 = vmatprep.subr.bf16.mxu0 0
    %1211 = vmatpush1.bf16.msra.mxu0 0
    %1212 = vmatprep.subr.bf16.mxu0 0
    %1213 = vmatpush1.bf16.msra.mxu0 0
    %1214 = vmatprep.subr.bf16.mxu0 0
    %1215 = vmatpush1.bf16.msra.mxu0 0
    %1216 = vmatprep.mubr.bf16.mxu0 0
    %1217 = vmatmul.mubr.bf16.gmra.mrb[0].mxu0 %v1112
    %v1218 = vpop.f32.mrb[0].mxu0
    %v1219 = vadd.f32 %v1134, %v1218
    %v1220 = vpop.f32.mrb[0].mxu0
    %v1221 = vpop.f32.mrb[0].mxu0
    %v1222 = vpop.f32.mrb[0].mxu0
    %1223 = vdwg.mxu0
    %1224 = vst [vmem:[%s7] sm:$0xff] %v1219
    // Predicated region
    $region38: #{mlp_forward.1} parent=1 // pred_check
      _
    $region39: #{mlp_forward.1} parent=1 // pred_check_branch
      %1226 = sbr.rel (0) target = $region41
    $region40: #{mlp_forward.1} parent=1 // pred_region
      _
    $region41: #{mlp_forward.1} parent=1 // pred_fallthru
      _
    // Predicated region
    $region42: #{mlp_forward.1} parent=1 // pred_check
      _
    $region43: #{mlp_forward.1} parent=1 // pred_check_branch
      %1228 = sbr.rel (0) target = $region45
    $region44: #{mlp_forward.1} parent=1 // pred_region
      _
    $region45: #{mlp_forward.1} parent=1 // pred_fallthru
      _
    %1229 = vsyncpa [#allocation3], 1
    %1230 = vsyncpa [#allocation5], 1

</llo_original>
